<compile_context>
chip_gen: v5e
topology: v5e:2x2
jax: 0.10.0
libtpu: 0.0.40
codegen_flags: <defaults>
</compile_context>

<pallas_src>
import math

import jax
import jax.numpy as jnp
from jax.experimental import pallas as pl
from jax.experimental.pallas import tpu as pltpu


def _round_up(x, m):
    return (x + m - 1) // m * m


def _patchify_matmul_kernel(x_ref, w_ref, b_ref, o_ref):
    # x_ref: (TM, Kp) compute dtype, w_ref: (Kp, Cp) compute dtype,
    # b_ref: (1, Cp) f32, o_ref: (TM, Cp) output dtype.
    acc = jnp.dot(x_ref[...], w_ref[...], preferred_element_type=jnp.float32)
    o_ref[...] = (acc + b_ref[...]).astype(o_ref.dtype)


def vit_stem_patchify(
    x,
    weight,
    bias,
    k,
    *,
    compute_dtype=jnp.bfloat16,
    tm_max=1024,
    channels_last=False,
    vmem_budget_bytes=40 * 1024 * 1024,
):
    """Forward pass of ViTStemPatchify (Conv2d stride=k, kernel=k, bias=True).

    x      : (N, C_in, H, W)    NCHW
    weight : (C_out, C_in, k, k)
    bias   : (C_out,)
    returns: (N, C_out, H//k, W//k)  (or (N, H//k, W//k, C_out) if channels_last)
    """
    N, C, H, W = x.shape
    C_out = weight.shape[0]
    assert H % k == 0 and W % k == 0
    Hp, Wp = H // k, W // k
    out_dtype = x.dtype

    # Cast BEFORE the patch-extraction shuffle: the op is HBM-bound, so halving
    # the bytes moved by the glue + the kernel is the main lever besides fusion.
    xc = x.astype(compute_dtype)
    wc = weight.astype(compute_dtype)

    # --- glue: extract non-overlapping k x k patches (see TODO(synk) above) ---
    # (N, C, Hp, k, Wp, k) -> (N, Hp, Wp, C, k, k) -> (M, K)
    x_patches = (
        xc.reshape(N, C, Hp, k, Wp, k)
        .transpose(0, 2, 4, 1, 3, 5)
        .reshape(N * Hp * Wp, C * k * k)
    )
    w_mat = wc.reshape(C_out, C * k * k).T          # (K, C_out)
    b_mat = bias.astype(jnp.float32).reshape(1, C_out)

    M, K = x_patches.shape

    # --- gated pads for lane density (no-ops for real ViT stems: K=768, C_out=768/1024) ---
    Kp = _round_up(K, 128)
    Cp = _round_up(C_out, 128)
    if Kp != K:
        x_patches = jnp.pad(x_patches, ((0, 0), (0, Kp - K)))
        w_mat = jnp.pad(w_mat, ((0, Kp - K), (0, 0)))
    if Cp != C_out:
        w_mat = jnp.pad(w_mat, ((0, 0), (0, Cp - C_out)))
        b_mat = jnp.pad(b_mat, ((0, 0), (0, Cp - C_out)))

    # --- tile M from an explicit VMEM budget (no M padding; partial block is masked) ---
    x_bytes = jnp.dtype(compute_dtype).itemsize
    o_bytes = jnp.dtype(out_dtype).itemsize

    def _vmem_usage(tm):
        x_buf = 2 * tm * Kp * x_bytes        # double-buffered streaming x tiles
        o_buf = 2 * tm * Cp * o_bytes        # double-buffered streaming out tiles
        w_buf = 1 * Kp * Cp * x_bytes        # Buffered(1): single resident weight copy
        b_buf = 1 * Cp * 4                   # resident f32 bias
        return x_buf + o_buf + w_buf + b_buf

    TM = _round_up(min(tm_max, _round_up(M, 16)), 16)
    while TM > 16 and _vmem_usage(TM) > vmem_budget_bytes:
        TM = _round_up(TM // 2, 16)

    grid_m = pl.cdiv(M, TM)
    vmem_limit = max(_vmem_usage(TM) + 4 * 1024 * 1024, 16 * 1024 * 1024)
    vmem_limit = min(vmem_limit, 56 * 1024 * 1024)   # stay under v7x physical VMEM

    # --- hot path: tiled matmul + bias on the MXU ---
    out = pl.pallas_call(
        _patchify_matmul_kernel,
        out_shape=jax.ShapeDtypeStruct((M, Cp), out_dtype),
        grid_spec=pltpu.PrefetchScalarGridSpec(
            num_scalar_prefetch=0,
            grid=(grid_m,),
            in_specs=[
                # streaming x tiles (default double buffering is enough once the
                # weight is resident; bump to pl.Buffered(3) only if profiling
                # shows exposed input DMA).
                pl.BlockSpec((TM, Kp), lambda i: (i, 0)),
                # constant-index weight & bias: never re-fetched -> single buffer.
                pl.BlockSpec((Kp, Cp), lambda i: (0, 0),
                             pipeline_mode=pl.Buffered(1)),
                pl.BlockSpec((1, Cp), lambda i: (0, 0),
                             pipeline_mode=pl.Buffered(1)),
            ],
            out_specs=pl.BlockSpec((TM, Cp), lambda i: (i, 0)),
        ),
        compiler_params=pltpu.CompilerParams(
            # Independent M tiles -> parallel (lets v7x shard across its two
            # TensorCores; harmless single-core no-op on v5e/v6e).
            dimension_semantics=("parallel",),
            vmem_limit_bytes=int(vmem_limit),
        ),
    )(x_patches, w_mat, b_mat)

    # --- glue: strip C_out pad (no-op for real stems), restore conv output layout ---
    if Cp != C_out:
        out = out[:, :C_out]
    out = out.reshape(N, Hp, Wp, C_out)
    if channels_last:
        # TODO(synk): prefer this path when the downstream consumer accepts NHWC /
        # (tokens, C_out); it skips a full read+write of the output.
        return out
    return out.transpose(0, 3, 1, 2)


def init_params(key, w_in, w_out, k):
    """Deterministic init mimicking torch.nn.Conv2d defaults (kaiming uniform)."""
    kw, kb = jax.random.split(key)
    fan_in = w_in * k * k
    bound_w = math.sqrt(1.0 / fan_in) * math.sqrt(3.0)  # kaiming_uniform(a=sqrt(5))
    weight = jax.random.uniform(
        kw, (w_out, w_in, k, k), jnp.float32, -bound_w, bound_w
    )
    bound_b = 1.0 / math.sqrt(fan_in)
    bias = jax.random.uniform(kb, (w_out,), jnp.float32, -bound_b, bound_b)
    return weight, bias


if __name__ == "__main__":
    # small shapes: batch=2, w_in=4, spatial=16, patch k=4, w_out=32
    N, w_in, H, W = 2, 4, 16, 16
    w_out, k = 32, 4

    key = jax.random.PRNGKey(0)
    kx, kp = jax.random.split(key)
    x = jax.random.normal(kx, (N, w_in, H, W), jnp.float32)
    weight, bias = init_params(kp, w_in, w_out, k)

    # plain-JAX strided conv reference (same semantics as nn.Conv2d(k, stride=k))
    ref = jax.lax.conv_general_dilated(
        x, weight, window_strides=(k, k), padding="VALID",
        dimension_numbers=("NCHW", "OIHW", "NCHW"),
    ) + bias.reshape(1, w_out, 1, 1)

    # f32 compute path: bit-exact Conv2d + bias semantics.
    y32 = jax.block_until_ready(
        vit_stem_patchify(x, weight, bias, k, compute_dtype=jnp.float32)
    )
    assert y32.shape == (N, w_out, H // k, W // k)
    assert jnp.allclose(y32, ref, atol=1e-4, rtol=1e-4)

    # default bf16-fed MXU path (f32 accumulate + f32 bias add): looser tolerance.
    y16 = jax.block_until_ready(vit_stem_patchify(x, weight, bias, k))
    assert y16.shape == (N, w_out, H // k, W // k)
    assert jnp.allclose(y16, ref, atol=5e-2, rtol=5e-2)

    print("KERNEL_OK")
</pallas_src>

<mosaic_0001>
module attributes {stable_mosaic.version = 11 : i64} {
  func.func @_patchify_matmul_kernel(%arg0: i32, %arg1: memref<32x128xf32, #tpu.memory_space<vmem>>, %arg2: memref<128x128xf32, #tpu.memory_space<vmem>>, %arg3: memref<1x128xf32, #tpu.memory_space<vmem>>, %arg4: memref<32x128xf32, #tpu.memory_space<vmem>>) attributes {dimension_semantics = [#tpu.dimension_semantics<parallel>], iteration_bounds = array<i64: 1>, scalar_prefetch = 0 : i64, scratch_operands = 0 : i64, tpu.core_type = #tpu.core_type<tc>, window_params = [{transform_indices = @transform_0, window_bounds = array<i64: 32, 128>}, {pipeline_mode = #tpu.pipeline_mode<synchronous>, transform_indices = @transform_1, window_bounds = array<i64: 128, 128>}, {pipeline_mode = #tpu.pipeline_mode<synchronous>, transform_indices = @transform_2, window_bounds = array<i64: 1, 128>}, {transform_indices = @transform_3, window_bounds = array<i64: 32, 128>}]} {
    %c0 = arith.constant 0 : index
    %c0_0 = arith.constant 0 : index
    %0 = vector.load %arg1[%c0, %c0_0] : memref<32x128xf32, #tpu.memory_space<vmem>>, vector<32x128xf32>
    %c0_1 = arith.constant 0 : index
    %c0_2 = arith.constant 0 : index
    %1 = vector.load %arg2[%c0_1, %c0_2] : memref<128x128xf32, #tpu.memory_space<vmem>>, vector<128x128xf32>
    %cst = arith.constant dense<0.000000e+00> : vector<32x128xf32>
    %2 = tpu.matmul %0, %1, %cst {dimension_numbers = #tpu.dot_dimension_numbers<[1], [0], [0], [1], [0, 0, 1, 1], [], []>} : vector<32x128xf32>, vector<128x128xf32>, vector<32x128xf32> -> vector<32x128xf32>
    %c0_3 = arith.constant 0 : index
    %c0_4 = arith.constant 0 : index
    %3 = vector.load %arg3[%c0_3, %c0_4] : memref<1x128xf32, #tpu.memory_space<vmem>>, vector<1x128xf32>
    %4 = vector.broadcast %3 : vector<1x128xf32> to vector<32x128xf32>
    %5 = arith.addf %2, %4 : vector<32x128xf32>
    %c0_5 = arith.constant 0 : index
    %c0_6 = arith.constant 0 : index
    %6 = vector.load %arg4[%c0_5, %c0_6] : memref<32x128xf32, #tpu.memory_space<vmem>>, vector<32x128xf32>
    tpu.vector_store %arg4[%c0_5, %c0_6], %5 {strides = array<i32>} : memref<32x128xf32, #tpu.memory_space<vmem>>, vector<32x128xf32>,
    return
  }
  func.func @transform_0(%arg0: i32) -> (i32, i32) {
    %c0_i32 = arith.constant 0 : i32
    %c0_i32_0 = arith.constant 0 : i32
    return %arg0, %c0_i32 : i32, i32
  }
  func.func @transform_1(%arg0: i32) -> (i32, i32) {
    %c0_i32 = arith.constant 0 : i32
    %c0_i32_0 = arith.constant 0 : i32
    %c0_i32_1 = arith.constant 0 : i32
    return %c0_i32, %c0_i32_0 : i32, i32
  }
  func.func @transform_2(%arg0: i32) -> (i32, i32) {
    %c0_i32 = arith.constant 0 : i32
    %c0_i32_0 = arith.constant 0 : i32
    %c0_i32_1 = arith.constant 0 : i32
    return %c0_i32, %c0_i32_0 : i32, i32
  }
  func.func @transform_3(%arg0: i32) -> (i32, i32) {
    %c0_i32 = arith.constant 0 : i32
    %c0_i32_0 = arith.constant 0 : i32
    return %arg0, %c0_i32 : i32, i32
  }
}

</mosaic_0001>

<llo_original>
// kernel: tpu_custom_call.1
$region0: #{tpu_custom_call.1}
  #allocation0 [shape = 'u32[]', space=smem, size = 0x4, offset = 0x4, fixed_abs, tag = 'smem constant byte address 0x4 - core index']
  #allocation1 [shape = 'u32[72,128]{1,0:T(1,128)}', space=vmem, size = 0x9000, scoped, tag = 'internal scratch']
  %s0 = inlined_call_operand.hbm [shape: f32[32,128], index: 0, kind: input, shape index: {}]
  %s1 = inlined_call_operand.hbm [shape: f32[128,128], index: 1, kind: input, shape index: {}]
  %s2 = inlined_call_operand.vmem [shape: f32[1,128], index: 2, kind: input, shape index: {}]
  %s3 = inlined_call_operand.hbm [shape: f32[32,128], index: 3, kind: output, shape index: {}]
  %s4 = sld [smem:[#allocation0]]
  $region30: #{tpu_custom_call.1} parent=0
    _
  %s6 = ssub.s32 1, %s4
  %s7 = scalar_select 0, %s6, %s4
  $region1: #{tpu_custom_call.1} parent=0
    #allocation2 [shape = 'u8[16384]{0}', space=vmem, size = 0x4000, scoped, tag = 'input window, operand 0, single buffered']
    #allocation3 [shape = 's32[1]{0}', space=sflag, size = 0x4, scoped, tag = 'scoped memory for tpu_custom_call.1']
    #allocation4 [shape = 's32[1]{0}', space=sflag, size = 0x4, scoped, tag = 'scoped memory for tpu_custom_call.1']
    #allocation5 [shape = 'u8[65536]{0}', space=vmem, size = 0x10000, scoped, tag = 'input window, operand 1, single buffered']
    #allocation6 [shape = 's32[1]{0}', space=sflag, size = 0x4, scoped, tag = 'scoped memory for tpu_custom_call.1']
    #allocation7 [shape = 'u8[16384]{0}', space=vmem, size = 0x4000, scoped, tag = 'output window, operand 0, single buffered']
    %8 = vsyncpa [#allocation3], 0
    %9 = vsyncpa [#allocation6], 0
    %10 = vsyncpa [#allocation4], 0
    // Predicated region
    $region2: #{tpu_custom_call.1} parent=1 // pred_check
      _
    $region3: #{tpu_custom_call.1} parent=1 // pred_check_branch
      %12 = sbr.rel (0) target = $region5
    $region4: #{tpu_custom_call.1} parent=1 // pred_region
      %14 = vsyncadd [#allocation3], 0
      %s15 = sshll.u32 %s0, 4
      %s16 = int_to_ptr.hbm [resolvable:$true] %s15
      %s17 = sshll.u32 [#allocation2], 4
      %s18 = int_to_ptr.vmem [resolvable:$true] %s17
      %23 = dma.hbm_to_vmem [thread:$0]  %s16, 512, %s18, [#allocation3], 128, 128, 8
    $region5: #{tpu_custom_call.1} parent=1 // pred_fallthru
      _
    // Predicated region
    $region6: #{tpu_custom_call.1} parent=1 // pred_check
      _
    $region7: #{tpu_custom_call.1} parent=1 // pred_check_branch
      %25 = sbr.rel (0) target = $region9
    $region8: #{tpu_custom_call.1} parent=1 // pred_region
      %27 = vsyncadd [#allocation6], 0
      %s28 = sshll.u32 %s1, 4
      %s29 = int_to_ptr.hbm [resolvable:$true] %s28
      %s30 = sshll.u32 [#allocation5], 4
      %s31 = int_to_ptr.vmem [resolvable:$true] %s30
      %36 = dma.hbm_to_vmem [thread:$0]  %s29, 2048, %s31, [#allocation6], 128, 128, 8
    $region9: #{tpu_custom_call.1} parent=1 // pred_fallthru
      _
    // Predicated region
    $region10: #{tpu_custom_call.1} parent=1 // pred_check
      _
    $region11: #{tpu_custom_call.1} parent=1 // pred_check_branch
      %38 = sbr.rel (0) target = $region13
    $region12: #{tpu_custom_call.1} parent=1 // pred_region
      _
    $region13: #{tpu_custom_call.1} parent=1 // pred_fallthru
      _
    // Predicated region
    $region14: #{tpu_custom_call.1} parent=1 // pred_check
      _
    $region15: #{tpu_custom_call.1} parent=1 // pred_check_branch
      %40 = sbr.rel (0) target = $region17
    $region16: #{tpu_custom_call.1} parent=1 // pred_region
      %42 = dma.done [#allocation3], 512
    $region17: #{tpu_custom_call.1} parent=1 // pred_fallthru
      _
    // Predicated region
    $region18: #{tpu_custom_call.1} parent=1 // pred_check
      _
    $region19: #{tpu_custom_call.1} parent=1 // pred_check_branch
      %44 = sbr.rel (0) target = $region21
    $region20: #{tpu_custom_call.1} parent=1 // pred_region
      %46 = dma.done [#allocation6], 2048
    $region21: #{tpu_custom_call.1} parent=1 // pred_fallthru
      _
    %v47 = vld [vmem:[#allocation2] sm:$0xff]
    %v48 = vld [vmem:[#allocation2 + $0x8] sm:$0xff]
    %v49 = vld [vmem:[#allocation2 + $0x10] sm:$0xff]
    %v50 = vld [vmem:[#allocation2 + $0x18] sm:$0xff]
    %v51 = vld [vmem:[#allocation5] sm:$0xff]
    %v52 = vld [vmem:[#allocation5 + $0x8] sm:$0xff]
    %v53 = vld [vmem:[#allocation5 + $0x10] sm:$0xff]
    %v54 = vld [vmem:[#allocation5 + $0x18] sm:$0xff]
    %v55 = vld [vmem:[#allocation5 + $0x20] sm:$0xff]
    %v56 = vld [vmem:[#allocation5 + $0x28] sm:$0xff]
    %v57 = vld [vmem:[#allocation5 + $0x30] sm:$0xff]
    %v58 = vld [vmem:[#allocation5 + $0x38] sm:$0xff]
    %v59 = vld [vmem:[#allocation5 + $0x40] sm:$0xff]
    %v60 = vld [vmem:[#allocation5 + $0x48] sm:$0xff]
    %v61 = vld [vmem:[#allocation5 + $0x50] sm:$0xff]
    %v62 = vld [vmem:[#allocation5 + $0x58] sm:$0xff]
    %v63 = vld [vmem:[#allocation5 + $0x60] sm:$0xff]
    %v64 = vld [vmem:[#allocation5 + $0x68] sm:$0xff]
    %v65 = vld [vmem:[#allocation5 + $0x70] sm:$0xff]
    %v66 = vld [vmem:[#allocation5 + $0x78] sm:$0xff]
    %v67 = vld [vmem:[%s2] sm:$0x1]
    %v69 = vperm.slane %v67, 0
    %71 = vmatpush.msra.mxu0 %v66
    %72 = vmatpush.msra.mxu0 %v65
    %73 = vmatpush.msra.mxu0 %v64
    %74 = vmatpush.msra.mxu0 %v63
    %75 = vmatpush.msra.mxu0 %v62
    %76 = vmatpush.msra.mxu0 %v61
    %77 = vmatpush.msra.mxu0 %v60
    %78 = vmatpush.msra.mxu0 %v59
    %79 = vmatpush.msra.mxu0 %v58
    %80 = vmatpush.msra.mxu0 %v57
    %81 = vmatpush.msra.mxu0 %v56
    %82 = vmatpush.msra.mxu0 %v55
    %83 = vmatpush.msra.mxu0 %v54
    %84 = vmatpush.msra.mxu0 %v53
    %85 = vmatpush.msra.mxu0 %v52
    %86 = vmatpush.msra.mxu0 %v51
    %87 = vmatmul.f32.gmra.mxu0 %v47
    %v88 = vpop.f32.mrf.mxu0
    %v89 = vadd.f32 %v69, %v88
    %90 = vmatmul.f32.gmra.mxu0 %v48
    %v91 = vpop.f32.mrf.mxu0
    %v92 = vadd.f32 %v69, %v91
    %93 = vmatmul.f32.gmra.mxu0 %v49
    %v94 = vpop.f32.mrf.mxu0
    %v95 = vadd.f32 %v69, %v94
    %96 = vmatmul.f32.gmra.mxu0 %v50
    %v97 = vpop.f32.mrf.mxu0
    %v98 = vadd.f32 %v69, %v97
    %99 = vdwg.mxu0
    %100 = vst [vmem:[#allocation7] sm:$0xff] %v89
    %101 = vst [vmem:[#allocation7 + $0x8] sm:$0xff] %v92
    %102 = vst [vmem:[#allocation7 + $0x10] sm:$0xff] %v95
    %103 = vst [vmem:[#allocation7 + $0x18] sm:$0xff] %v98
    // Predicated region
    $region22: #{tpu_custom_call.1} parent=1 // pred_check
      _
    $region23: #{tpu_custom_call.1} parent=1 // pred_check_branch
      %105 = sbr.rel (0) target = $region25
    $region24: #{tpu_custom_call.1} parent=1 // pred_region
      %107 = vsyncadd [#allocation4], 0
      %s108 = sshll.u32 [#allocation7], 4
      %s109 = int_to_ptr.vmem [resolvable:$true] %s108
      %s110 = sshll.u32 %s3, 4
      %s111 = int_to_ptr.hbm [resolvable:$true] %s110
      %116 = dma.vmem_to_hbm [thread:$0]  %s109, 512, %s111, [#allocation4], 128, 128, 8
    $region25: #{tpu_custom_call.1} parent=1 // pred_fallthru
      _
    // Predicated region
    $region26: #{tpu_custom_call.1} parent=1 // pred_check
      _
    $region27: #{tpu_custom_call.1} parent=1 // pred_check_branch
      %118 = sbr.rel (0) target = $region29
    $region28: #{tpu_custom_call.1} parent=1 // pred_region
      %120 = dma.done [#allocation4], 512
    $region29: #{tpu_custom_call.1} parent=1 // pred_fallthru
      _
    %121 = vsyncpa [#allocation3], 1
    %122 = vsyncpa [#allocation6], 1
    %123 = vsyncpa [#allocation4], 1

</llo_original>
